<compile_context>
chip_gen: v7x
topology: tpu7x:2x2x1
jax: 0.10.0
libtpu: 0.0.40
codegen_flags: <defaults>
</compile_context>

<pallas_src>
import functools

import jax
import jax.numpy as jnp
from jax import lax
from jax.experimental import pallas as pl
from jax.experimental.pallas import tpu as pltpu


def _vmem_limit_bytes():
    """3/4 of physical VMEM, capped at 96 MiB (-> ~48 MiB on v7x's 64 MiB)."""
    try:
        cap = int(pltpu.get_tpu_info().vmem_capacity_bytes)
        return int(min(cap * 3 // 4, 96 * 1024 * 1024))
    except Exception:
        return 64 * 1024 * 1024


def _stage1_tiling(rows, max_tile=1024):
    """Pick (n_par, tiles_per_chunk, tm) with rows == n_par*tiles*tm.

    Prefers 2 parallel chunks (megacore) and the largest 16-aligned row tile
    (bf16 outputs -> 16-sublane alignment) up to `max_tile`; falls back to a
    single full-array tile when no aligned divisor exists.
    """
    for n_par in (2, 1):
        if rows % n_par:
            continue
        rpp = rows // n_par
        start = min(max_tile, rpp)
        start -= start % 16
        tm = 0
        for cand in range(start, 0, -16):
            if rpp % cand == 0:
                tm = cand
                break
        if tm:
            return n_par, rpp // tm, tm
    return 1, 1, rows                       # single tile == full array dims


# ---------------------------------------------------------------------------
# Stage 1: fused q|k|v projection + BatchNorm statistics accumulation.
# Grid (parallel chunk, row tile).  Stats blocks are per-chunk and stay
# resident across the 'arbitrary' tile axis (accumulators).
# ---------------------------------------------------------------------------
def qkv_proj_kernel(x_ref, w_ref, q_ref, k_ref, v_ref, sum_ref, ssq_ref,
                    *, HK, UK, UV):
    f32 = jnp.float32
    # in-kernel bf16 cast of the activations (review: no wrapper cast pass).
    x = x_ref[...].astype(jnp.bfloat16)
    qkv = jnp.dot(x, w_ref[...], preferred_element_type=f32)     # (tm, C) f32

    # three separate bf16 outputs (review: no wrapper column slicing).
    # TODO(synk): at production widths pad each output to a 128 multiple for
    # fully lane-dense stores.
    q_ref[...] = qkv[:, :HK].astype(q_ref.dtype)
    k_ref[...] = qkv[:, HK:HK + UK].astype(k_ref.dtype)
    v_ref[...] = qkv[:, HK + UK:].astype(v_ref.dtype)

    @pl.when(pl.program_id(1) == 0)
    def _():
        sum_ref[...] = jnp.zeros_like(sum_ref)
        ssq_ref[...] = jnp.zeros_like(ssq_ref)

    ps = jnp.sum(qkv, axis=0, keepdims=True)                     # (1, C)
    pq = jnp.sum(qkv * qkv, axis=0, keepdims=True)               # (1, C)
    sum_ref[...] += jnp.broadcast_to(ps, sum_ref.shape)
    ssq_ref[...] += jnp.broadcast_to(pq, ssq_ref.shape)


# ---------------------------------------------------------------------------
# Stage 2: per-batch lambda computation (grid over B, 'parallel').
# ---------------------------------------------------------------------------
def lambda_kernel(q_ref, k_ref, v_ref, sq_ref, tq_ref, sv_ref, tv_ref,
                  wrel_ref, bmask_ref, repv_ref, sumk_ref, y_ref,
                  *, N, H, K, U, V, R, PAD):
    f32 = jnp.float32
    bf16 = jnp.bfloat16

    # BatchNorm (training mode) folded into per-channel scale/shift -> one FMA.
    q = q_ref[...] * sq_ref[...] + tq_ref[...]                   # (N, HK) f32
    v = v_ref[...] * sv_ref[...] + tv_ref[...]                   # (N, UV) f32
    q_b = q.astype(bf16)
    v_b = v.astype(bf16)

    # softmax over the sequence axis per (u, k) channel; divide on the EUP.
    kk = k_ref[...].astype(f32)                                  # (N, UK)
    kexp = jnp.exp(kk - jnp.max(kk, axis=0, keepdims=True))
    ksm = kexp * pl.reciprocal(jnp.sum(kexp, axis=0, keepdims=True),
                               approx=True)

    # ---- content lambda ----------------------------------------------------
    # g[u*K+k, u'*V+v] = sum_n ksm[n, u*K+k] * v[n, u'*V+v]; lam_c sums the U
    # diagonal (K, V) blocks.
    g = lax.dot_general(ksm.astype(bf16), v_b, (((0,), (0,)), ((), ())),
                        preferred_element_type=f32)              # (UK, UV)
    lam_c = jnp.zeros((K, V), f32)
    for u in range(U):                                           # U tiny, static
        lam_c = lam_c + g[u * K:(u + 1) * K, u * V:(u + 1) * V]

    # content output: single (N, HK) @ (HK, HV) MXU matmul against the
    # block-diagonal kron(I_H, lam_c) built in-kernel (review item).
    lam_row = jnp.concatenate([lam_c.astype(bf16)] * H, axis=1)  # (K, HV)
    lam_kron = jnp.concatenate([lam_row] * H, axis=0) * bmask_ref[...]  # (HK, HV)
    y = jnp.dot(q_b, lam_kron, preferred_element_type=f32)       # (N, HV)

    # ---- positional lambda: R shifts fused into ONE MXU matmul --------------
    # vsh_r[i] = v[i + r - PAD] with zero edges; shift via pltpu.roll (XLU).
    pos = lax.broadcasted_iota(jnp.int32, (N, U * V), 0)
    shifted = []
    for r in range(R):                                           # R tiny, static
        s = r - PAD
        if s == 0:
            vsh = v
        else:
            vsh = pltpu.roll(v, shift=(-s) % N, axis=0)          # v[(i+s) mod N]
            vsh = jnp.where((pos + s >= 0) & (pos + s < N), vsh, 0.0)
        shifted.append(vsh.astype(bf16))
    vsh_all = jnp.concatenate(shifted, axis=1)                   # (N, R*UV)
    lam_p = jnp.dot(vsh_all, wrel_ref[...],
                    preferred_element_type=f32)                  # (N, K*V)

    # ---- positional output: per-head accumulation, no (N, H*K*V) expansion --
    # y_h[n, v] = sum_k q[n, h*K+k] * lam_p[n, k*V+v]; repv/sumk are tiny
    # (K, K*V) / (K*V, V) 0/1 operators (the big HK*V constants are gone).
    y_heads = []
    for h in range(H):                                           # H tiny, static
        q_h = q_b[:, h * K:(h + 1) * K]                          # (N, K)
        q_hexp = jnp.dot(q_h, repv_ref[...],
                         preferred_element_type=f32)             # (N, K*V)
        prod = (q_hexp * lam_p).astype(bf16)                     # f32 mul, 1 round
        y_heads.append(jnp.dot(prod, sumk_ref[...],
                               preferred_element_type=f32))      # (N, V)
    y = y + jnp.concatenate(y_heads, axis=1)                     # (N, HV)

    # single contiguous full-width store per batch tile.
    y_ref[...] = y.astype(y_ref.dtype)


def lambda_forward(x, params, *, heads, key_depth, intra_depth,
                   local_context_size, out_dtype=jnp.float32):
    assert local_context_size is not None and local_context_size % 2 == 1
    B, N, D = x.shape
    H, K, U = heads, key_depth, intra_depth
    V = D // H
    R = local_context_size
    PAD = R // 2
    HK, UK, UV, KV, HV = H * K, U * K, U * V, K * V, H * V
    C = HK + UK + UV
    eps = 1e-5
    f32 = jnp.float32
    bf16 = jnp.bfloat16
    vmem_limit = _vmem_limit_bytes()

    # -------- Stage 1: fused projection + BN statistics ---------------------
    w2 = jnp.concatenate([params["Wq"], params["Wk"], params["Wv"]],
                         axis=1).astype(bf16)                    # (D, C)
    x2 = x.reshape(B * N, D)                                     # f32, cast in-kernel
    rows = B * N
    n_par, tpp, tm = _stage1_tiling(rows)

    qkv_kernel = functools.partial(qkv_proj_kernel, HK=HK, UK=UK, UV=UV)
    q2, k2, v2, ssum, sssq = pl.pallas_call(
        qkv_kernel,
        grid=(n_par, tpp),
        in_specs=[pl.BlockSpec((tm, D), lambda p, i: (p * tpp + i, 0)),
                  pl.BlockSpec((D, C), lambda p, i: (0, 0))],
        out_specs=(pl.BlockSpec((tm, HK), lambda p, i: (p * tpp + i, 0)),
                   pl.BlockSpec((tm, UK), lambda p, i: (p * tpp + i, 0)),
                   pl.BlockSpec((tm, UV), lambda p, i: (p * tpp + i, 0)),
                   pl.BlockSpec((None, 8, C), lambda p, i: (p, 0, 0)),
                   pl.BlockSpec((None, 8, C), lambda p, i: (p, 0, 0))),
        out_shape=(jax.ShapeDtypeStruct((rows, HK), bf16),
                   jax.ShapeDtypeStruct((rows, UK), bf16),
                   jax.ShapeDtypeStruct((rows, UV), bf16),
                   jax.ShapeDtypeStruct((n_par, 8, C), f32),
                   jax.ShapeDtypeStruct((n_par, 8, C), f32)),
        compiler_params=pltpu.CompilerParams(
            dimension_semantics=("parallel", "arbitrary"),
            vmem_limit_bytes=vmem_limit),
    )(x2, w2)

    # finish BatchNorm stats (tiny (1, C) XLA work): var = E[x^2] - mean^2.
    # Clamped at 0 against cancellation; at production B*N switch to per-tile
    # centered accumulation (review correctness note).
    csum = jnp.sum(ssum[:, :1, :], axis=0)                       # (1, C)
    cssq = jnp.sum(sssq[:, :1, :], axis=0)                       # (1, C)
    mean = csum / rows
    var = jnp.maximum(cssq / rows - mean * mean, 0.0)
    inv = lax.rsqrt(var + eps)
    scale_q = params["gamma_q"] * inv[:, :HK]
    shift_q = params["beta_q"] - mean[:, :HK] * scale_q
    scale_v = params["gamma_v"] * inv[:, HK + UK:]
    shift_v = params["beta_v"] - mean[:, HK + UK:] * scale_v

    # per-batch layout (metadata-only reshapes of the separate bf16 outputs).
    q3 = q2.reshape(B, N, HK)
    k3 = k2.reshape(B, N, UK)
    v3 = v2.reshape(B, N, UV)

    # ---- precomputed constant operators (built once, shipped in bf16) -------
    eye_v = jnp.eye(V, dtype=f32)
    # fused rel-pos weight: rows ordered r-major, (r*UV + u*V + v', k*V + v'')
    wrel_fused = (params["Wrel"].transpose(0, 2, 1)[:, :, None, :, None]
                  * eye_v[None, None, :, None, :]
                  ).reshape(R * UV, KV).astype(bf16)
    # block-diagonal head mask for kron(I_H, lam_c)
    bmask = jnp.kron(jnp.eye(H, dtype=f32), jnp.ones((K, V), f32)).astype(bf16)
    # per-head operators: repeat each q column V times / reduce over k
    repv_k = jnp.repeat(jnp.eye(K, dtype=f32), V, axis=1).astype(bf16)   # (K, KV)
    sumk_k = jnp.kron(jnp.ones((K, 1), f32), eye_v).astype(bf16)         # (KV, V)

    # -------- Stage 2: per-batch lambda kernel ------------------------------
    # TODO(synk): add a sequence-tile grid axis (with a +/-PAD halo of v) for
    # long sequences on v7x; single-buffer the grid-constant operands.
    kernel = functools.partial(lambda_kernel, N=N, H=H, K=K, U=U, V=V,
                               R=R, PAD=PAD)
    y = pl.pallas_call(
        kernel,
        grid=(B,),
        in_specs=[
            pl.BlockSpec((None, N, HK), lambda b: (b, 0, 0)),   # q (bf16)
            pl.BlockSpec((None, N, UK), lambda b: (b, 0, 0)),   # k (bf16)
            pl.BlockSpec((None, N, UV), lambda b: (b, 0, 0)),   # v (bf16)
            pl.BlockSpec((1, HK), lambda b: (0, 0)),            # BN scale_q
            pl.BlockSpec((1, HK), lambda b: (0, 0)),            # BN shift_q
            pl.BlockSpec((1, UV), lambda b: (0, 0)),            # BN scale_v
            pl.BlockSpec((1, UV), lambda b: (0, 0)),            # BN shift_v
            pl.BlockSpec((R * UV, KV), lambda b: (0, 0)),       # wrel_fused
            pl.BlockSpec((HK, HV), lambda b: (0, 0)),           # bmask
            pl.BlockSpec((K, KV), lambda b: (0, 0)),            # repv_k
            pl.BlockSpec((KV, V), lambda b: (0, 0)),            # sumk_k
        ],
        out_specs=pl.BlockSpec((None, N, HV), lambda b: (b, 0, 0)),
        out_shape=jax.ShapeDtypeStruct((B, N, HV), out_dtype),  # bf16 ok if
        compiler_params=pltpu.CompilerParams(                   # consumers allow
            dimension_semantics=("parallel",),
            vmem_limit_bytes=vmem_limit),
    )(q3, k3, v3, scale_q, shift_q, scale_v, shift_v,
      wrel_fused, bmask, repv_k, sumk_k)
    return y


def lambda_reference(x, params, *, heads, key_depth, intra_depth,
                     local_context_size):
    """Plain-JAX f32 reference mirroring the PyTorch forward (local path)."""
    B, N, D = x.shape
    H, K, U = heads, key_depth, intra_depth
    V = D // H
    R = local_context_size
    PAD = R // 2
    eps = 1e-5

    x2 = x.reshape(B * N, D)
    q = x2 @ params["Wq"]
    k = x2 @ params["Wk"]
    v = x2 @ params["Wv"]

    def bn(t, g, b_):
        m = t.mean(0, keepdims=True)
        var = ((t - m) ** 2).mean(0, keepdims=True)
        return (t - m) / jnp.sqrt(var + eps) * g + b_

    q = bn(q, params["gamma_q"], params["beta_q"]).reshape(B, N, H, K)
    v = bn(v, params["gamma_v"], params["beta_v"]).reshape(B, N, U, V)
    k = jax.nn.softmax(k.reshape(B, N, U, K), axis=1)   # softmax over n

    lam_c = jnp.einsum('bnuk,bnuv->bkv', k, v)
    Yc = jnp.einsum('bnhk,bkv->bnhv', q, lam_c)

    vpad = jnp.pad(v, ((0, 0), (PAD, PAD), (0, 0), (0, 0)))
    lam_p = jnp.zeros((B, N, K, V), jnp.float32)
    for r in range(R):
        lam_p = lam_p + jnp.einsum('bnuv,ku->bnkv',
                                   vpad[:, r:r + N], params["Wrel"][r])
    Yp = jnp.einsum('bnhk,bnkv->bnhv', q, lam_p)
    return (Yc + Yp).reshape(B, N, H * V)


if __name__ == "__main__":
    # config: hidden_size=32, num_lambda_queries=4 -> lambda_query_size=8,
    #         key_depth=16, intra_depth=4, local_context_size=3.
    # seq=64 keeps things small but 16-aligned so the bf16 tiles / megacore
    # stage-1 path are actually exercised.
    B, N, D = 2, 64, 32
    H, K, U, R = 4, 16, 4, 3
    V = D // H

    root = jax.random.PRNGKey(0)
    kx, kq, kk, kv, kr = jax.random.split(root, 5)
    x = jax.random.normal(kx, (B, N, D), jnp.float32)
    params = {
        "Wq": jax.random.normal(kq, (D, H * K), jnp.float32) * 0.1,
        "Wk": jax.random.normal(kk, (D, U * K), jnp.float32) * 0.1,
        "Wv": jax.random.normal(kv, (D, U * V), jnp.float32) * 0.1,
        "gamma_q": jnp.ones((1, H * K), jnp.float32),
        "beta_q": jnp.zeros((1, H * K), jnp.float32),
        "gamma_v": jnp.ones((1, U * V), jnp.float32),
        "beta_v": jnp.zeros((1, U * V), jnp.float32),
        "Wrel": jax.random.normal(kr, (R, K, U), jnp.float32),
    }

    y = lambda_forward(x, params, heads=H, key_depth=K, intra_depth=U,
                       local_context_size=R)
    y = jax.block_until_ready(y)

    y_ref = lambda_reference(x, params, heads=H, key_depth=K, intra_depth=U,
                             local_context_size=R)
    assert y.shape == (B, N, D)
    # Tolerance budget: bf16 projections + bf16 inter-stage storage + bf16 MXU
    # operands throughout stage 2 + approx EUP reciprocal in the softmax
    # (reference is full f32).  Each bf16 rounding is <=2^-8 relative.
    err = float(jnp.max(jnp.abs(y - y_ref)))
    scale = float(jnp.max(jnp.abs(y_ref)))
    assert err <= 3e-2 * scale + 1e-3, (err, scale)
    print("KERNEL_OK")
</pallas_src>

<mosaic_0001>
module attributes {stable_mosaic.version = 11 : i64} {
  func.func @qkv_proj_kernel(%arg0: i32, %arg1: i32, %arg2: memref<64x32xf32, #tpu.memory_space<vmem>>, %arg3: memref<32x160xbf16, #tpu.memory_space<vmem>>, %arg4: memref<64x64xbf16, #tpu.memory_space<vmem>>, %arg5: memref<64x64xbf16, #tpu.memory_space<vmem>>, %arg6: memref<64x32xbf16, #tpu.memory_space<vmem>>, %arg7: memref<1x8x160xf32, #tpu.memory_space<vmem>>, %arg8: memref<1x8x160xf32, #tpu.memory_space<vmem>>) attributes {dimension_semantics = [#tpu.dimension_semantics<parallel>, #tpu.dimension_semantics<arbitrary>], iteration_bounds = array<i64: 2, 1>, scalar_prefetch = 0 : i64, scratch_operands = 0 : i64, tpu.core_type = #tpu.core_type<tc>, window_params = [{transform_indices = @transform_0, window_bounds = array<i64: 64, 32>}, {pipeline_mode = #tpu.pipeline_mode<synchronous>, transform_indices = @transform_1, window_bounds = array<i64: 32, 160>}, {transform_indices = @transform_2, window_bounds = array<i64: 64, 64>}, {transform_indices = @transform_3, window_bounds = array<i64: 64, 64>}, {transform_indices = @transform_4, window_bounds = array<i64: 64, 32>}, {transform_indices = @transform_5, window_bounds = array<i64: 1, 8, 160>}, {transform_indices = @transform_6, window_bounds = array<i64: 1, 8, 160>}]} {
    %c0 = arith.constant 0 : index
    %c0_0 = arith.constant 0 : index
    %0 = vector.load %arg2[%c0, %c0_0] : memref<64x32xf32, #tpu.memory_space<vmem>>, vector<64x32xf32>
    %1 = arith.truncf %0 : vector<64x32xf32> to vector<64x32xbf16>
    %c0_1 = arith.constant 0 : index
    %c0_2 = arith.constant 0 : index
    %2 = vector.load %arg3[%c0_1, %c0_2] : memref<32x160xbf16, #tpu.memory_space<vmem>>, vector<32x160xbf16>
    %cst = arith.constant dense<0.000000e+00> : vector<64x160xf32>
    %3 = tpu.matmul %1, %2, %cst {dimension_numbers = #tpu.dot_dimension_numbers<[1], [0], [0], [1], [0, 0, 1, 1], [], []>} : vector<64x32xbf16>, vector<32x160xbf16>, vector<64x160xf32> -> vector<64x160xf32>
    %4 = vector.extract_strided_slice %3 {offsets = [0, 0], sizes = [64, 64], strides = [1, 1]} : vector<64x160xf32> to vector<64x64xf32>
    %5 = arith.truncf %4 : vector<64x64xf32> to vector<64x64xbf16>
    %c0_3 = arith.constant 0 : index
    %c0_4 = arith.constant 0 : index
    %6 = vector.load %arg4[%c0_3, %c0_4] : memref<64x64xbf16, #tpu.memory_space<vmem>>, vector<64x64xbf16>
    tpu.vector_store %arg4[%c0_3, %c0_4], %5 {strides = array<i32>} : memref<64x64xbf16, #tpu.memory_space<vmem>>, vector<64x64xbf16>,
    %7 = vector.extract_strided_slice %3 {offsets = [0, 64], sizes = [64, 64], strides = [1, 1]} : vector<64x160xf32> to vector<64x64xf32>
    %8 = arith.truncf %7 : vector<64x64xf32> to vector<64x64xbf16>
    %c0_5 = arith.constant 0 : index
    %c0_6 = arith.constant 0 : index
    %9 = vector.load %arg5[%c0_5, %c0_6] : memref<64x64xbf16, #tpu.memory_space<vmem>>, vector<64x64xbf16>
    tpu.vector_store %arg5[%c0_5, %c0_6], %8 {strides = array<i32>} : memref<64x64xbf16, #tpu.memory_space<vmem>>, vector<64x64xbf16>,
    %10 = vector.extract_strided_slice %3 {offsets = [0, 128], sizes = [64, 32], strides = [1, 1]} : vector<64x160xf32> to vector<64x32xf32>
    %11 = arith.truncf %10 : vector<64x32xf32> to vector<64x32xbf16>
    %c0_7 = arith.constant 0 : index
    %c0_8 = arith.constant 0 : index
    %12 = vector.load %arg6[%c0_7, %c0_8] : memref<64x32xbf16, #tpu.memory_space<vmem>>, vector<64x32xbf16>
    tpu.vector_store %arg6[%c0_7, %c0_8], %11 {strides = array<i32>} : memref<64x32xbf16, #tpu.memory_space<vmem>>, vector<64x32xbf16>,
    %c0_i32 = arith.constant 0 : i32
    %13 = arith.cmpi eq, %arg1, %c0_i32 : i32
    %14 = arith.extui %13 : i1 to i32
    %c0_i32_9 = arith.constant 0 : i32
    %15 = arith.cmpi ne, %14, %c0_i32_9 : i32
    scf.if %15 {
      %cst_24 = arith.constant 0.000000e+00 : f32
      %37 = vector.broadcast %cst_24 : f32 to vector<8x160xf32>
      %c0_25 = arith.constant 0 : index
      %c0_26 = arith.constant 0 : index
      %c0_27 = arith.constant 0 : index
      %38 = vector.load %arg7[%c0_25, %c0_26, %c0_27] : memref<1x8x160xf32, #tpu.memory_space<vmem>>, vector<1x8x160xf32>
      %39 = vector.shape_cast %38 : vector<1x8x160xf32> to vector<8x160xf32>
      %40 = vector.shape_cast %37 : vector<8x160xf32> to vector<1x8x160xf32>
      tpu.vector_store %arg7[%c0_25, %c0_26, %c0_27], %40 {strides = array<i32>} : memref<1x8x160xf32, #tpu.memory_space<vmem>>, vector<1x8x160xf32>,
      %cst_28 = arith.constant 0.000000e+00 : f32
      %41 = vector.broadcast %cst_28 : f32 to vector<8x160xf32>
      %c0_29 = arith.constant 0 : index
      %c0_30 = arith.constant 0 : index
      %c0_31 = arith.constant 0 : index
      %42 = vector.load %arg8[%c0_29, %c0_30, %c0_31] : memref<1x8x160xf32, #tpu.memory_space<vmem>>, vector<1x8x160xf32>
      %43 = vector.shape_cast %42 : vector<1x8x160xf32> to vector<8x160xf32>
      %44 = vector.shape_cast %41 : vector<8x160xf32> to vector<1x8x160xf32>
      tpu.vector_store %arg8[%c0_29, %c0_30, %c0_31], %44 {strides = array<i32>} : memref<1x8x160xf32, #tpu.memory_space<vmem>>, vector<1x8x160xf32>,
    } else {
    }
    %cst_10 = arith.constant dense<0.000000e+00> : vector<160xf32>
    %16 = vector.multi_reduction <add>, %3, %cst_10 [0] : vector<64x160xf32> to vector<160xf32>
    %17 = vector.shape_cast %16 : vector<160xf32> to vector<1x160xf32>
    %18 = arith.mulf %3, %3 : vector<64x160xf32>
    %cst_11 = arith.constant dense<0.000000e+00> : vector<160xf32>
    %19 = vector.multi_reduction <add>, %18, %cst_11 [0] : vector<64x160xf32> to vector<160xf32>
    %20 = vector.shape_cast %19 : vector<160xf32> to vector<1x160xf32>
    %c0_12 = arith.constant 0 : index
    %c0_13 = arith.constant 0 : index
    %c0_14 = arith.constant 0 : index
    %21 = vector.load %arg7[%c0_12, %c0_13, %c0_14] : memref<1x8x160xf32, #tpu.memory_space<vmem>>, vector<1x8x160xf32>
    %22 = vector.shape_cast %21 : vector<1x8x160xf32> to vector<8x160xf32>
    %23 = vector.shape_cast %17 : vector<1x160xf32> to vector<1x160xf32>
    %24 = vector.broadcast %23 : vector<1x160xf32> to vector<8x160xf32>
    %25 = arith.addf %22, %24 : vector<8x160xf32>
    %c0_15 = arith.constant 0 : index
    %c0_16 = arith.constant 0 : index
    %c0_17 = arith.constant 0 : index
    %26 = vector.load %arg7[%c0_15, %c0_16, %c0_17] : memref<1x8x160xf32, #tpu.memory_space<vmem>>, vector<1x8x160xf32>
    %27 = vector.shape_cast %26 : vector<1x8x160xf32> to vector<8x160xf32>
    %28 = vector.shape_cast %25 : vector<8x160xf32> to vector<1x8x160xf32>
    tpu.vector_store %arg7[%c0_15, %c0_16, %c0_17], %28 {strides = array<i32>} : memref<1x8x160xf32, #tpu.memory_space<vmem>>, vector<1x8x160xf32>,
    %c0_18 = arith.constant 0 : index
    %c0_19 = arith.constant 0 : index
    %c0_20 = arith.constant 0 : index
    %29 = vector.load %arg8[%c0_18, %c0_19, %c0_20] : memref<1x8x160xf32, #tpu.memory_space<vmem>>, vector<1x8x160xf32>
    %30 = vector.shape_cast %29 : vector<1x8x160xf32> to vector<8x160xf32>
    %31 = vector.shape_cast %20 : vector<1x160xf32> to vector<1x160xf32>
    %32 = vector.broadcast %31 : vector<1x160xf32> to vector<8x160xf32>
    %33 = arith.addf %30, %32 : vector<8x160xf32>
    %c0_21 = arith.constant 0 : index
    %c0_22 = arith.constant 0 : index
    %c0_23 = arith.constant 0 : index
    %34 = vector.load %arg8[%c0_21, %c0_22, %c0_23] : memref<1x8x160xf32, #tpu.memory_space<vmem>>, vector<1x8x160xf32>
    %35 = vector.shape_cast %34 : vector<1x8x160xf32> to vector<8x160xf32>
    %36 = vector.shape_cast %33 : vector<8x160xf32> to vector<1x8x160xf32>
    tpu.vector_store %arg8[%c0_21, %c0_22, %c0_23], %36 {strides = array<i32>} : memref<1x8x160xf32, #tpu.memory_space<vmem>>, vector<1x8x160xf32>,
    return
  }
  func.func @transform_0(%arg0: i32, %arg1: i32) -> (i32, i32) {
    %c1_i32 = arith.constant 1 : i32
    %0 = arith.muli %arg0, %c1_i32 : i32
    %1 = arith.addi %0, %arg1 : i32
    %c0_i32 = arith.constant 0 : i32
    %c0_i32_0 = arith.constant 0 : i32
    return %1, %c0_i32 : i32, i32
  }
  func.func @transform_1(%arg0: i32, %arg1: i32) -> (i32, i32) {
    %c0_i32 = arith.constant 0 : i32
    %c0_i32_0 = arith.constant 0 : i32
    %c0_i32_1 = arith.constant 0 : i32
    return %c0_i32, %c0_i32_0 : i32, i32
  }
  func.func @transform_2(%arg0: i32, %arg1: i32) -> (i32, i32) {
    %c1_i32 = arith.constant 1 : i32
    %0 = arith.muli %arg0, %c1_i32 : i32
    %1 = arith.addi %0, %arg1 : i32
    %c0_i32 = arith.constant 0 : i32
    %c0_i32_0 = arith.constant 0 : i32
    return %1, %c0_i32 : i32, i32
  }
  func.func @transform_3(%arg0: i32, %arg1: i32) -> (i32, i32) {
    %c1_i32 = arith.constant 1 : i32
    %0 = arith.muli %arg0, %c1_i32 : i32
    %1 = arith.addi %0, %arg1 : i32
    %c0_i32 = arith.constant 0 : i32
    %c0_i32_0 = arith.constant 0 : i32
    return %1, %c0_i32 : i32, i32
  }
  func.func @transform_4(%arg0: i32, %arg1: i32) -> (i32, i32) {
    %c1_i32 = arith.constant 1 : i32
    %0 = arith.muli %arg0, %c1_i32 : i32
    %1 = arith.addi %0, %arg1 : i32
    %c0_i32 = arith.constant 0 : i32
    %c0_i32_0 = arith.constant 0 : i32
    return %1, %c0_i32 : i32, i32
  }
  func.func @transform_5(%arg0: i32, %arg1: i32) -> (i32, i32, i32) {
    %c0_i32 = arith.constant 0 : i32
    %c0_i32_0 = arith.constant 0 : i32
    %c0_i32_1 = arith.constant 0 : i32
    return %arg0, %c0_i32, %c0_i32_0 : i32, i32, i32
  }
  func.func @transform_6(%arg0: i32, %arg1: i32) -> (i32, i32, i32) {
    %c0_i32 = arith.constant 0 : i32
    %c0_i32_0 = arith.constant 0 : i32
    %c0_i32_1 = arith.constant 0 : i32
    return %arg0, %c0_i32, %c0_i32_0 : i32, i32, i32
  }
}

</mosaic_0001>

<llo_original>
// kernel: tpu_custom_call.1
$region0: #{tpu_custom_call.1}
  #allocation0 [shape = 'u32[]', space=smem, size = 0x4, offset = 0x4, fixed_abs, tag = 'smem constant byte address 0x4 - core index']
  #allocation1 [shape = 'u32[144,128]{1,0:T(1,128)}', space=vmem, size = 0x12000, scoped, tag = 'internal scratch']
  %s0 = inlined_call_operand.hbm [shape: f32[128,32], index: 0, kind: input, shape index: {}]
  %s1 = inlined_call_operand.hbm [shape: bf16[32,160], index: 1, kind: input, shape index: {}]
  %s2 = inlined_call_operand.hbm [shape: bf16[128,64], index: 2, kind: output, shape index: {0}]
  %s3 = inlined_call_operand.hbm [shape: bf16[128,64], index: 3, kind: output, shape index: {1}]
  %s4 = inlined_call_operand.hbm [shape: bf16[128,32], index: 4, kind: output, shape index: {2}]
  %s5 = inlined_call_operand.hbm [shape: f32[2,8,160], index: 5, kind: output, shape index: {3}]
  %s6 = inlined_call_operand.hbm [shape: f32[2,8,160], index: 6, kind: output, shape index: {4}]
  %7 = xla_tuple %s2, %s3, %s4, %s5, %s6
  %s8 = sld [smem:[#allocation0]]
  $region85: #{tpu_custom_call.1} parent=0
    _
  %s10 = ssub.s32 1, %s8
  %s11 = scalar_select 0, %s10, %s8
  $region1: #{tpu_custom_call.1} parent=0
    #allocation2 [shape = 'u8[65536]{0}', space=vmem, size = 0x10000, scoped, tag = 'input window, operand 0']
    #allocation3 [shape = 's32[2]{0}', space=sflag, size = 0x8, scoped, tag = 'scoped memory for tpu_custom_call.1']
    #allocation4 [shape = 's32[2]{0}', space=sflag, size = 0x8, scoped, tag = 'scoped memory for tpu_custom_call.1']
    #allocation5 [shape = 'u8[16384]{0}', space=vmem, size = 0x4000, scoped, tag = 'input window, operand 1, single buffered']
    #allocation6 [shape = 's32[1]{0}', space=sflag, size = 0x4, scoped, tag = 'scoped memory for tpu_custom_call.1']
    #allocation7 [shape = 'u8[32768]{0}', space=vmem, size = 0x8000, scoped, tag = 'output window, operand 0']
    #allocation8 [shape = 'u8[32768]{0}', space=vmem, size = 0x8000, scoped, tag = 'output window, operand 1']
    #allocation9 [shape = 's32[2]{0}', space=sflag, size = 0x8, scoped, tag = 'scoped memory for tpu_custom_call.1']
    #allocation10 [shape = 'u8[32768]{0}', space=vmem, size = 0x8000, scoped, tag = 'output window, operand 2']
    #allocation11 [shape = 'u8[16384]{0}', space=vmem, size = 0x4000, scoped, tag = 'output window, operand 3']
    #allocation12 [shape = 's32[2]{0}', space=sflag, size = 0x8, scoped, tag = 'scoped memory for tpu_custom_call.1']
    #allocation13 [shape = 'u8[16384]{0}', space=vmem, size = 0x4000, scoped, tag = 'output window, operand 4']
    %12 = vsyncpa [#allocation3], 0
    %s13 = scalar_lea.sflag [#allocation3], 1
    %14 = vsyncpa %s13, 0
    %15 = vsyncpa [#allocation6], 0
    %16 = vsyncpa [#allocation4], 0
    %s17 = scalar_lea.sflag [#allocation4], 1
    %18 = vsyncpa %s17, 0
    %19 = vsyncpa [#allocation9], 0
    %s20 = scalar_lea.sflag [#allocation9], 1
    %21 = vsyncpa %s20, 0
    %22 = vsyncpa [#allocation12], 0
    %s23 = scalar_lea.sflag [#allocation12], 1
    %24 = vsyncpa %s23, 0
    loop: start=0, step=1, limit=4
    $region2: #{tpu_custom_call.1} parent=1 // loop_pre_header
      _
    $region3: #{tpu_custom_call.1} parent=1 // loop_header
      %s26 = sphi 0, %s30
      %p27 = scmp.ge.s32.totalorder %s26, 4
      %s33 = sphi 0, %s45
      %s34 = sphi 0, %s41
      %s35 = sphi 0, %s33
      %s36 = sphi 0, %s34
      %s37 = sphi 0, %s35
      %s38 = sphi 0, %s36
      %s50 = sphi 0, %s52
      %s53 = sphi 0, %s50
      %s54 = sphi 0, %s53
      %s70 = sphi 0, %s54
      %s74 = sphi 0, %s74
      %s76 = sphi 0, %s74
      %s77 = sphi 0, %s76
      %s91 = sphi 0, %s77
      %s99 = sphi 0, %s101
      %s102 = sphi 0, %s99
      %s103 = sphi 0, %s102
      %s119 = sphi 0, %s103
      %s127 = sphi 0, %s129
      %s130 = sphi 0, %s127
      %s131 = sphi 0, %s130
      %s147 = sphi 0, %s131
      %s155 = sphi 0, %s157
      %s158 = sphi 0, %s155
      %s159 = sphi 0, %s158
      %s175 = sphi 0, %s159
      %s181 = sphi 0, %s183
      %s184 = sphi 0, %s181
      %s185 = sphi 0, %s184
      %s201 = sphi 0, %s185
      %s207 = sphi 0, %s209
      %s210 = sphi 0, %s207
      %s211 = sphi 0, %s210
      %s227 = sphi 0, %s211
    $region4: #{tpu_custom_call.1} parent=1 // loop_header_branch
      %29 = sbr.rel (%p27) target = $region8
    $region5: #{tpu_custom_call.1} parent=1 // loop_body
      %s31 = ssub.s32 %s26, 1
      %s32 = ssub.s32 %s26, 2
      %s39 = sadd.s32 1, %s34
      %p40 = scmp.ge.s32.totalorder %s39, 1
      %s41 = scalar_select %p40, 0, %s39
      %s42 = sadd.s32 1, %s33
      %s43 = scalar_select %p40, %s42, %s33
      %p44 = scmp.ge.s32.totalorder %s43, 2
      %s45 = scalar_select %p44, 0, %s43
      %s46 = sadd.s32 %s33, %s34
      %s47 = sadd.s32 %s45, %s41
      %s48 = ssub.s32 %s46, %s47
      %p49 = scmp.eq.s32.totalorder %s48, 0
      %s51 = sadd.s32 %s50, 1
      %s52 = scalar_select %p49, %s50, %s51
      %p55 = pneg %p49
      %p56 = scmp.eq.s32.totalorder %s26, 1
      %p57 = por %p55, %p56
      %p58 = scmp.ne.s32.totalorder %s50, %s53
      %p59 = scmp.eq.s32.totalorder %s26, 0
      %p60 = por %p58, %p59
      %p61 = scmp.ne.s32.totalorder %s50, %s53
      %p62 = scmp.eq.s32.totalorder %s31, 1
      %p63 = por %p61, %p62
      %p64 = scmp.ne.s32.totalorder %s53, %s54
      %p65 = scmp.eq.s32.totalorder %s31, 0
      %p66 = por %p64, %p65
      %p67 = scmp.ne.s32.totalorder %s53, %s54
      %p68 = scmp.eq.s32.totalorder %s32, 1
      %p69 = por %p67, %p68
      %p71 = scmp.ne.s32.totalorder %s54, %s70
      %p72 = scmp.eq.s32.totalorder %s32, 0
      %p73 = por %p71, %p72
      %s75 = sadd.s32 %s74, 1
      %p78 = scmp.eq.s32.totalorder %s26, 1
      %p79 = scmp.ne.s32.totalorder %s74, %s76
      %p80 = scmp.eq.s32.totalorder %s26, 0
      %p81 = por %p79, %p80
      %p82 = scmp.ne.s32.totalorder %s74, %s76
      %p83 = scmp.eq.s32.totalorder %s31, 1
      %p84 = por %p82, %p83
      %p85 = scmp.ne.s32.totalorder %s76, %s77
      %p86 = scmp.eq.s32.totalorder %s31, 0
      %p87 = por %p85, %p86
      %p88 = scmp.ne.s32.totalorder %s76, %s77
      %p89 = scmp.eq.s32.totalorder %s32, 1
      %p90 = por %p88, %p89
      %p92 = scmp.ne.s32.totalorder %s77, %s91
      %p93 = scmp.eq.s32.totalorder %s32, 0
      %p94 = por %p92, %p93
      %s95 = sadd.s32 %s33, %s34
      %s96 = sadd.s32 %s45, %s41
      %s97 = ssub.s32 %s95, %s96
      %p98 = scmp.eq.s32.totalorder %s97, 0
      %s100 = sadd.s32 %s99, 1
      %s101 = scalar_select %p98, %s99, %s100
      %p104 = pneg %p98
      %p105 = scmp.eq.s32.totalorder %s26, 1
      %p106 = por %p104, %p105
      %p107 = scmp.ne.s32.totalorder %s99, %s102
      %p108 = scmp.eq.s32.totalorder %s26, 0
      %p109 = por %p107, %p108
      %p110 = scmp.ne.s32.totalorder %s99, %s102
      %p111 = scmp.eq.s32.totalorder %s31, 1
      %p112 = por %p110, %p111
      %p113 = scmp.ne.s32.totalorder %s102, %s103
      %p114 = scmp.eq.s32.totalorder %s31, 0
      %p115 = por %p113, %p114
      %p116 = scmp.ne.s32.totalorder %s102, %s103
      %p117 = scmp.eq.s32.totalorder %s32, 1
      %p118 = por %p116, %p117
      %p120 = scmp.ne.s32.totalorder %s103, %s119
      %p121 = scmp.eq.s32.totalorder %s32, 0
      %p122 = por %p120, %p121
      %s123 = sadd.s32 %s33, %s34
      %s124 = sadd.s32 %s45, %s41
      %s125 = ssub.s32 %s123, %s124
      %p126 = scmp.eq.s32.totalorder %s125, 0
      %s128 = sadd.s32 %s127, 1
      %s129 = scalar_select %p126, %s127, %s128
      %p132 = pneg %p126
      %p133 = scmp.eq.s32.totalorder %s26, 1
      %p134 = por %p132, %p133
      %p135 = scmp.ne.s32.totalorder %s127, %s130
      %p136 = scmp.eq.s32.totalorder %s26, 0
      %p137 = por %p135, %p136
      %p138 = scmp.ne.s32.totalorder %s127, %s130
      %p139 = scmp.eq.s32.totalorder %s31, 1
      %p140 = por %p138, %p139
      %p141 = scmp.ne.s32.totalorder %s130, %s131
      %p142 = scmp.eq.s32.totalorder %s31, 0
      %p143 = por %p141, %p142
      %p144 = scmp.ne.s32.totalorder %s130, %s131
      %p145 = scmp.eq.s32.totalorder %s32, 1
      %p146 = por %p144, %p145
      %p148 = scmp.ne.s32.totalorder %s131, %s147
      %p149 = scmp.eq.s32.totalorder %s32, 0
      %p150 = por %p148, %p149
      %s151 = sadd.s32 %s33, %s34
      %s152 = sadd.s32 %s45, %s41
      %s153 = ssub.s32 %s151, %s152
      %p154 = scmp.eq.s32.totalorder %s153, 0
      %s156 = sadd.s32 %s155, 1
      %s157 = scalar_select %p154, %s155, %s156
      %p160 = pneg %p154
      %p161 = scmp.eq.s32.totalorder %s26, 1
      %p162 = por %p160, %p161
      %p163 = scmp.ne.s32.totalorder %s155, %s158
      %p164 = scmp.eq.s32.totalorder %s26, 0
      %p165 = por %p163, %p164
      %p166 = scmp.ne.s32.totalorder %s155, %s158
      %p167 = scmp.eq.s32.totalorder %s31, 1
      %p168 = por %p166, %p167
      %p169 = scmp.ne.s32.totalorder %s158, %s159
      %p170 = scmp.eq.s32.totalorder %s31, 0
      %p171 = por %p169, %p170
      %p172 = scmp.ne.s32.totalorder %s158, %s159
      %p173 = scmp.eq.s32.totalorder %s32, 1
      %p174 = por %p172, %p173
      %p176 = scmp.ne.s32.totalorder %s159, %s175
      %p177 = scmp.eq.s32.totalorder %s32, 0
      %p178 = por %p176, %p177
      %s179 = ssub.s32 %s33, %s45
      %p180 = scmp.eq.s32.totalorder %s179, 0
      %s182 = sadd.s32 %s181, 1
      %s183 = scalar_select %p180, %s181, %s182
      %p186 = pneg %p180
      %p187 = scmp.eq.s32.totalorder %s26, 1
      %p188 = por %p186, %p187
      %p189 = scmp.ne.s32.totalorder %s181, %s184
      %p190 = scmp.eq.s32.totalorder %s26, 0
      %p191 = por %p189, %p190
      %p192 = scmp.ne.s32.totalorder %s181, %s184
      %p193 = scmp.eq.s32.totalorder %s31, 1
      %p194 = por %p192, %p193
      %p195 = scmp.ne.s32.totalorder %s184, %s185
      %p196 = scmp.eq.s32.totalorder %s31, 0
      %p197 = por %p195, %p196
      %p198 = scmp.ne.s32.totalorder %s184, %s185
      %p199 = scmp.eq.s32.totalorder %s32, 1
      %p200 = por %p198, %p199
      %p202 = scmp.ne.s32.totalorder %s185, %s201
      %p203 = scmp.eq.s32.totalorder %s32, 0
      %p204 = por %p202, %p203
      %s205 = ssub.s32 %s33, %s45
      %p206 = scmp.eq.s32.totalorder %s205, 0
      %s208 = sadd.s32 %s207, 1
      %s209 = scalar_select %p206, %s207, %s208
      %p212 = pneg %p206
      %p213 = scmp.eq.s32.totalorder %s26, 1
      %p214 = por %p212, %p213
      %p215 = scmp.ne.s32.totalorder %s207, %s210
      %p216 = scmp.eq.s32.totalorder %s26, 0
      %p217 = por %p215, %p216
      %p218 = scmp.ne.s32.totalorder %s207, %s210
      %p219 = scmp.eq.s32.totalorder %s31, 1
      %p220 = por %p218, %p219
      %p221 = scmp.ne.s32.totalorder %s210, %s211
      %p222 = scmp.eq.s32.totalorder %s31, 0
      %p223 = por %p221, %p222
      %p224 = scmp.ne.s32.totalorder %s210, %s211
      %p225 = scmp.eq.s32.totalorder %s32, 1
      %p226 = por %p224, %p225
      %p228 = scmp.ne.s32.totalorder %s211, %s227
      %p229 = scmp.eq.s32.totalorder %s32, 0
      %p230 = por %p228, %p229
      %p231 = scmp.le.s32.totalorder 1, %s26
      %p232 = scmp.lt.s32.totalorder %s26, 3
      %p233 = pnand %p231, %p232
      %p234 = pneg %p233
      // Predicated region
      $region9: #{tpu_custom_call.1} parent=5 // pred_check
        _
      $region10: #{tpu_custom_call.1} parent=5 // pred_check_branch
        %236 = sbr.rel (%p233) target = $region12
      $region11: #{tpu_custom_call.1} parent=5 // pred_region
        %s237 = ssub.s32 %s26, 1
        // Predicated region
        $region13: #{tpu_custom_call.1} parent=11 // pred_check
          %p238 = pneg %p87
        $region14: #{tpu_custom_call.1} parent=11 // pred_check_branch
          %240 = sbr.rel (%p238) target = $region16
        $region15: #{tpu_custom_call.1} parent=11 // pred_region
          %s242 = ssub.s32 512, 512
          %243 = vsyncadd [#allocation6], %s242
          %s244 = sshll.u32 [#allocation5], 4
          %s245 = int_to_ptr.vmem [resolvable:$true] %s244
          %250 = dma.hbm_to_vmem [thread:$0]  %s1, 512, %s245, [#allocation6], 128, 128, 8
        $region16: #{tpu_custom_call.1} parent=11 // pred_fallthru
          _
      $region12: #{tpu_custom_call.1} parent=5 // pred_fallthru
        _
      %p251 = scmp.lt.s32.totalorder %s26, 2
      // Predicated region
      $region17: #{tpu_custom_call.1} parent=5 // pred_check
        %p252 = pneg %p251
      $region18: #{tpu_custom_call.1} parent=5 // pred_check_branch
        %254 = sbr.rel (%p252) target = $region20
      $region19: #{tpu_custom_call.1} parent=5 // pred_region
        // Predicated region
        $region21: #{tpu_custom_call.1} parent=19 // pred_check
          %p255 = pneg %p60
        $region22: #{tpu_custom_call.1} parent=19 // pred_check_branch
          %257 = sbr.rel (%p255) target = $region24
        $region23: #{tpu_custom_call.1} parent=19 // pred_region
          %s258 = sand.u32 %s50, 1
          %s259 = scalar_lea.sflag [#allocation3], %s258
          %s260 = sand.u32 %s50, 1
          %s261 = smul.addr %s260, 64
          %s262 = scalar_lea.vmem [#allocation2], %s261
          %s263 = sadd.s32 %s33, %s34
          %s264 = smul.u32 8, %s263
          %s266 = ssub.s32 1024, 1024
          %267 = vsyncadd %s259, %s266
          %s268 = smul.addr %s264, 128
          %s269 = scalar_lea.hbm %s0, %s268
          %s270 = sshll.u32 %s262, 4
          %s271 = int_to_ptr.vmem [resolvable:$true] %s270
          %276 = dma.hbm_to_vmem [thread:$0]  %s269, 1024, %s271, %s259, 128, 128, 8
        $region24: #{tpu_custom_call.1} parent=19 // pred_fallthru
          _
      $region20: #{tpu_custom_call.1} parent=5 // pred_fallthru
        _
      %p277 = scmp.le.s32.totalorder 1, %s26
      %p278 = scmp.lt.s32.totalorder %s26, 3
      %p279 = pnand %p277, %p278
      %p280 = pneg %p279
      // Predicated region
      $region25: #{tpu_custom_call.1} parent=5 // pred_check
        _
      $region26: #{tpu_custom_call.1} parent=5 // pred_check_branch
        %282 = sbr.rel (%p279) target = $region28
      $region27: #{tpu_custom_call.1} parent=5 // pred_region
        %s283 = ssub.s32 %s26, 1
        %s284 = sand.u32 %s53, 1
        %s285 = scalar_lea.sflag [#allocation3], %s284
        %s286 = sand.u32 %s53, 1
        %s287 = smul.addr %s286, 64
        %s288 = scalar_lea.vmem [#allocation2], %s287
        // Predicated region
        $region29: #{tpu_custom_call.1} parent=27 // pred_check
          %p289 = pneg %p66
        $region30: #{tpu_custom_call.1} parent=27 // pred_check_branch
          %291 = sbr.rel (%p289) target = $region32
        $region31: #{tpu_custom_call.1} parent=27 // pred_region
          %292 = dma.done %s285, 1024
        $region32: #{tpu_custom_call.1} parent=27 // pred_fallthru
          _
        // Predicated region
        $region33: #{tpu_custom_call.1} parent=27 // pred_check
          %p293 = pneg %p87
        $region34: #{tpu_custom_call.1} parent=27 // pred_check_branch
          %295 = sbr.rel (%p293) target = $region36
        $region35: #{tpu_custom_call.1} parent=27 // pred_region
          %296 = dma.done [#allocation6], 512
        $region36: #{tpu_custom_call.1} parent=27 // pred_fallthru
          _
        %s297 = sand.u32 %s53, 1
        %s298 = scalar_lea.sflag [#allocation3], %s297
        %s299 = sand.u32 %s53, 1
        %s300 = smul.addr %s299, 64
        %s301 = scalar_lea.vmem [#allocation2], %s300
        %p302 = pneg %p66
        %p303 = pneg %p63
        %p304 = pneg %p87
        %p305 = pneg %p84
        %p306 = pneg %p115
        %p307 = pneg %p112
        %s308 = sand.u32 %s102, 1
        %s309 = scalar_lea.sflag [#allocation4], %s308
        %s310 = sand.u32 %s102, 1
        %s311 = smul.addr %s310, 32
        %s312 = scalar_lea.vmem [#allocation7], %s311
        %p313 = pneg %p143
        %p314 = pneg %p140
        %s315 = sand.u32 %s31, 1
        %s316 = scalar_lea.sflag [#allocation9], %s315
        %s317 = sand.u32 %s130, 1
        %s318 = smul.addr %s317, 32
        %s319 = scalar_lea.vmem [#allocation8], %s318
        %p320 = pneg %p171
        %p321 = pneg %p168
        %s322 = sand.u32 %s31, 1
        %s323 = scalar_lea.sflag [#allocation9], %s322
        %s324 = sand.u32 %s158, 1
        %s325 = smul.addr %s324, 32
        %s326 = scalar_lea.vmem [#allocation10], %s325
        %p327 = pneg %p197
        %p328 = pneg %p194
        %s329 = sand.u32 %s31, 1
        %s330 = scalar_lea.sflag [#allocation12], %s329
        %s331 = sand.u32 %s184, 1
        %s332 = smul.addr %s331, 16
        %s333 = scalar_lea.vmem [#allocation11], %s332
        %p334 = pneg %p223
        %p335 = pneg %p220
        %s336 = sand.u32 %s31, 1
        %s337 = scalar_lea.sflag [#allocation12], %s336
        %s338 = sand.u32 %s210, 1
        %s339 = smul.addr %s338, 16
        %s340 = scalar_lea.vmem [#allocation13], %s339
        %s341 = sadd.s32 %s35, %s36
        %s342 = smul.u32 8, %s341
        %s343 = sadd.s32 %s35, %s36
        %s344 = smul.u32 8, %s343
        %s345 = sadd.s32 %s35, %s36
        %s346 = smul.u32 8, %s345
        %s347 = sadd.s32 %s35, %s36
        %s348 = smul.u32 8, %s347
        %v350 = vld [vmem:[%s288] sm:$0xff]
        %v351 = vld [vmem:[%s288 + $0x8] sm:$0xff]
        %v352 = vld [vmem:[%s288 + $0x10] sm:$0xff]
        %v353 = vld [vmem:[%s288 + $0x18] sm:$0xff]
        %v354 = vld [vmem:[%s288 + $0x20] sm:$0xff]
        %v355 = vld [vmem:[%s288 + $0x28] sm:$0xff]
        %v356 = vld [vmem:[%s288 + $0x30] sm:$0xff]
        %v357 = vld [vmem:[%s288 + $0x38] sm:$0xff]
        %v358 = vpack.c.bf16 %v351, %v350
        %v359 = vpack.c.bf16 %v353, %v352
        %v360 = vpack.c.bf16 %v355, %v354
        %v361 = vpack.c.bf16 %v357, %v356
        %v362 = vld [vmem:[#allocation5] sm:$0xff]
        %v363 = vld [vmem:[#allocation5 + $0x8] sm:$0xff]
        %v364 = vld [vmem:[#allocation5 + $0x10] sm:$0xff]
        %v365 = vld [vmem:[#allocation5 + $0x18] sm:$0xff]
        %v370 = vunpack.c.l.b16 %v362
        %v371 = vunpack.c.h.b16 %v362
        %v372 = vunpack.c.l.b16 %v363
        %v373 = vunpack.c.h.b16 %v363
        %v374 = vunpack.c.l.b16 %v364
        %v375 = vunpack.c.h.b16 %v364
        %v376 = vunpack.c.l.b16 %v365
        %v377 = vunpack.c.h.b16 %v365
        %v378 = vpack.c.b16 %v372, %v370
        %v379 = vpack.c.b16 %v373, %v371
        %v380 = vpack.c.b16 %v376, %v374
        %v381 = vpack.c.b16 %v377, %v375
        %vm386 = vcmask 261120
        %v388 = vsel %vm386, %v358, 0
        %v391 = vsel %vm386, %v359, 0
        %v394 = vsel %vm386, %v360, 0
        %v397 = vsel %vm386, %v361, 0
        %399 = vmatprep.subr.bf16.mxu0 %v379
        %400 = vmatpush1.bf16.msra.mxu0 %v378
        %401 = vmatprep.subr.bf16.mxu0 %v381
        %402 = vmatpush1.bf16.msra.mxu0 %v380
        %403 = vmatprep.subr.bf16.mxu0 0
        %404 = vmatpush1.bf16.msra.mxu0 0
        %405 = vmatprep.subr.bf16.mxu0 0
        %406 = vmatpush1.bf16.msra.mxu0 0
        %407 = vmatprep.subr.bf16.mxu0 0
        %408 = vmatpush1.bf16.msra.mxu0 0
        %409 = vmatprep.subr.bf16.mxu0 0
        %410 = vmatpush1.bf16.msra.mxu0 0
        %411 = vmatprep.subr.bf16.mxu0 0
        %412 = vmatpush1.bf16.msra.mxu0 0
        %413 = vmatprep.subr.bf16.mxu0 0
        %414 = vmatpush1.bf16.msra.mxu0 0
        %415 = vmatprep.subr.bf16.mxu0 0
        %416 = vmatpush1.bf16.msra.mxu0 0
        %417 = vmatprep.subr.bf16.mxu0 0
        %418 = vmatpush1.bf16.msra.mxu0 0
        %419 = vmatprep.subr.bf16.mxu0 0
        %420 = vmatpush1.bf16.msra.mxu0 0
        %421 = vmatprep.subr.bf16.mxu0 0
        %422 = vmatpush1.bf16.msra.mxu0 0
        %423 = vmatprep.subr.bf16.mxu0 0
        %424 = vmatpush1.bf16.msra.mxu0 0
        %425 = vmatprep.subr.bf16.mxu0 0
        %426 = vmatpush1.bf16.msra.mxu0 0
        %427 = vmatprep.subr.bf16.mxu0 0
        %428 = vmatpush1.bf16.msra.mxu0 0
        %429 = vmatprep.subr.bf16.mxu0 0
        %430 = vmatpush1.bf16.msra.mxu0 0
        %431 = vmatprep.mubr.bf16.mxu0 0
        %432 = vmatmul.mubr.bf16.gmra.mrb[0].mxu0 %v388
        %v433 = vpop.f32.mrb[0].mxu0
        %v434 = vadd.f32 0.0, %v433
        %v435 = vpop.f32.mrb[0].mxu0
        %v436 = vadd.f32 0.0, %v435
        %v437 = vpop.f32.mrb[0].mxu0
        %v438 = vadd.f32 0.0, %v437
        %v439 = vpop.f32.mrb[0].mxu0
        %v440 = vadd.f32 0.0, %v439
        %441 = vmatprep.mubr.bf16.mxu0 0
        %442 = vmatmul.mubr.bf16.gmra.mrb[0].mxu0 %v391
        %v443 = vpop.f32.mrb[0].mxu0
        %v444 = vadd.f32 0.0, %v443
        %v445 = vpop.f32.mrb[0].mxu0
        %v446 = vadd.f32 0.0, %v445
        %v447 = vpop.f32.mrb[0].mxu0
        %v448 = vadd.f32 0.0, %v447
        %v449 = vpop.f32.mrb[0].mxu0
        %v450 = vadd.f32 0.0, %v449
        %451 = vmatprep.mubr.bf16.mxu0 0
        %452 = vmatmul.mubr.bf16.gmra.mrb[0].mxu0 %v394
        %v453 = vpop.f32.mrb[0].mxu0
        %v454 = vadd.f32 0.0, %v453
        %v455 = vpop.f32.mrb[0].mxu0
        %v456 = vadd.f32 0.0, %v455
        %v457 = vpop.f32.mrb[0].mxu0
        %v458 = vadd.f32 0.0, %v457
        %v459 = vpop.f32.mrb[0].mxu0
        %v460 = vadd.f32 0.0, %v459
        %461 = vmatprep.mubr.bf16.mxu0 0
        %462 = vmatmul.mubr.bf16.gmra.mrb[0].mxu0 %v397
        %v463 = vpop.f32.mrb[0].mxu0
        %v464 = vadd.f32 0.0, %v463
        %v465 = vpop.f32.mrb[0].mxu0
        %v466 = vadd.f32 0.0, %v465
        %v467 = vpop.f32.mrb[0].mxu0
        %v468 = vadd.f32 0.0, %v467
        %v469 = vpop.f32.mrb[0].mxu0
        %v470 = vadd.f32 0.0, %v469
        %471 = vdwg.mxu0
        %v472 = vpack.c.bf16 %v438, %v434
        %v473 = vpack.c.bf16 %v448, %v444
        %v474 = vpack.c.bf16 %v458, %v454
        %v475 = vpack.c.bf16 %v468, %v464
        %v480 = vunpack.c.l.b16 %v472
        %v481 = vunpack.c.h.b16 %v472
        %v482 = vunpack.c.l.b16 %v473
        %v483 = vunpack.c.h.b16 %v473
        %v484 = vunpack.c.l.b16 %v474
        %v485 = vunpack.c.h.b16 %v474
        %v486 = vunpack.c.l.b16 %v475
        %v487 = vunpack.c.h.b16 %v475
        %v488 = vpack.c.b16 %v480, %v480
        %v489 = vpack.c.b16 %v481, %v481
        %v490 = vpack.c.b16 %v482, %v482
        %v491 = vpack.c.b16 %v483, %v483
        %v492 = vpack.c.b16 %v484, %v484
        %v493 = vpack.c.b16 %v485, %v485
        %v494 = vpack.c.b16 %v486, %v486
        %v495 = vpack.c.b16 %v487, %v487
        %vm504 = vcmask 519168
        %505 = vst.msk [vmem:[%s312] sm:$0xf] %vm504, %v488
        %506 = vst.msk [vmem:[%s312 + $0x4] sm:$0xf] %vm504, %v489
        %507 = vst.msk [vmem:[%s312 + $0x8] sm:$0xf] %vm504, %v490
        %508 = vst.msk [vmem:[%s312 + $0xc] sm:$0xf] %vm504, %v491
        %509 = vst.msk [vmem:[%s312 + $0x10] sm:$0xf] %vm504, %v492
        %510 = vst.msk [vmem:[%s312 + $0x14] sm:$0xf] %vm504, %v493
        %511 = vst.msk [vmem:[%s312 + $0x18] sm:$0xf] %vm504, %v494
        %512 = vst.msk [vmem:[%s312 + $0x1c] sm:$0xf] %vm504, %v495
        %513 = vrot.lane.b32.xlu0 %v488, 64
        %v514 = vpop.permute.xlu0 %513
        %515 = vrot.lane.b32.xlu0 %v489, 64
        %v516 = vpop.permute.xlu0 %515
        %517 = vrot.lane.b32.xlu0 %v490, 64
        %v518 = vpop.permute.xlu0 %517
        %519 = vrot.lane.b32.xlu0 %v491, 64
        %v520 = vpop.permute.xlu0 %519
        %521 = vrot.lane.b32.xlu0 %v492, 64
        %v522 = vpop.permute.xlu0 %521
        %523 = vrot.lane.b32.xlu0 %v493, 64
        %v524 = vpop.permute.xlu0 %523
        %525 = vrot.lane.b32.xlu0 %v494, 64
        %v526 = vpop.permute.xlu0 %525
        %527 = vrot.lane.b32.xlu0 %v495, 64
        %v528 = vpop.permute.xlu0 %527
        %537 = vst.msk [vmem:[%s319] sm:$0xf] %vm504, %v514
        %538 = vst.msk [vmem:[%s319 + $0x4] sm:$0xf] %vm504, %v516
        %539 = vst.msk [vmem:[%s319 + $0x8] sm:$0xf] %vm504, %v518
        %540 = vst.msk [vmem:[%s319 + $0xc] sm:$0xf] %vm504, %v520
        %541 = vst.msk [vmem:[%s319 + $0x10] sm:$0xf] %vm504, %v522
        %542 = vst.msk [vmem:[%s319 + $0x14] sm:$0xf] %vm504, %v524
        %543 = vst.msk [vmem:[%s319 + $0x18] sm:$0xf] %vm504, %v526
        %544 = vst.msk [vmem:[%s319 + $0x1c] sm:$0xf] %vm504, %v528
        %v545 = vpack.c.bf16 %v440, %v436
        %v546 = vpack.c.bf16 %v450, %v446
        %v547 = vpack.c.bf16 %v460, %v456
        %v548 = vpack.c.bf16 %v470, %v466
        %v553 = vunpack.c.l.b16 %v545
        %v554 = vunpack.c.h.b16 %v545
        %v555 = vunpack.c.l.b16 %v546
        %v556 = vunpack.c.h.b16 %v546
        %v557 = vunpack.c.l.b16 %v547
        %v558 = vunpack.c.h.b16 %v547
        %v559 = vunpack.c.l.b16 %v548
        %v560 = vunpack.c.h.b16 %v548
        %v561 = vpack.c.b16 %v553, %v553
        %v562 = vpack.c.b16 %v554, %v554
        %v563 = vpack.c.b16 %v555, %v555
        %v564 = vpack.c.b16 %v556, %v556
        %v565 = vpack.c.b16 %v557, %v557
        %v566 = vpack.c.b16 %v558, %v558
        %v567 = vpack.c.b16 %v559, %v559
        %v568 = vpack.c.b16 %v560, %v560
        %vm577 = vcmask 257024
        %578 = vst.msk [vmem:[%s326] sm:$0xf] %vm577, %v561
        %579 = vst.msk [vmem:[%s326 + $0x4] sm:$0xf] %vm577, %v562
        %580 = vst.msk [vmem:[%s326 + $0x8] sm:$0xf] %vm577, %v563
        %581 = vst.msk [vmem:[%s326 + $0xc] sm:$0xf] %vm577, %v564
        %582 = vst.msk [vmem:[%s326 + $0x10] sm:$0xf] %vm577, %v565
        %583 = vst.msk [vmem:[%s326 + $0x14] sm:$0xf] %vm577, %v566
        %584 = vst.msk [vmem:[%s326 + $0x18] sm:$0xf] %vm577, %v567
        %585 = vst.msk [vmem:[%s326 + $0x1c] sm:$0xf] %vm577, %v568
        %p586 = scmp.eq.s32.totalorder %s36, 0
        // Predicated region
        $region37: #{tpu_custom_call.1} parent=27 // pred_check
          %p587 = pneg %p586
        $region38: #{tpu_custom_call.1} parent=27 // pred_check_branch
          %589 = sbr.rel (%p587) target = $region40
        $region39: #{tpu_custom_call.1} parent=27 // pred_region
          %590 = vst [vmem:[%s333] sm:$0xff] 0.0
          %591 = vst.msk [vmem:[%s333 + $0x8] sm:$0xff] %vm386, 0.0
          %592 = vst [vmem:[%s340] sm:$0xff] 0.0
          %593 = vst.msk [vmem:[%s340 + $0x8] sm:$0xff] %vm386, 0.0
        $region40: #{tpu_custom_call.1} parent=27 // pred_fallthru
          _
        %v594 = vadd.f32 %v434, %v438
        %v595 = vadd.f32 %v594, %v444
        %v596 = vadd.f32 %v595, %v448
        %v597 = vadd.f32 %v596, %v454
        %v598 = vadd.f32 %v597, %v458
        %v599 = vadd.f32 %v598, %v464
        %v600 = vadd.f32 %v599, %v468
        %v601 = vrot.slane %v600, 4
        %v602 = vadd.f32 %v600, %v601
        %v603 = vrot.slane %v602, 2
        %v604 = vadd.f32 %v602, %v603
        %v605 = vrot.slane %v604, 1
        %v606 = vadd.f32 %v604, %v605
        %v607 = vsel %vm386, %v436, 0.0
        %v608 = vsel %vm386, %v440, 0.0
        %v609 = vadd.f32 %v607, %v608
        %v610 = vsel %vm386, %v446, 0.0
        %v611 = vadd.f32 %v609, %v610
        %v612 = vsel %vm386, %v450, 0.0
        %v613 = vadd.f32 %v611, %v612
        %v614 = vsel %vm386, %v456, 0.0
        %v615 = vadd.f32 %v613, %v614
        %v616 = vsel %vm386, %v460, 0.0
        %v617 = vadd.f32 %v615, %v616
        %v618 = vsel %vm386, %v466, 0.0
        %v619 = vadd.f32 %v617, %v618
        %v620 = vsel %vm386, %v470, 0.0
        %v621 = vadd.f32 %v619, %v620
        %v622 = vrot.slane %v621, 4
        %v623 = vadd.f32 %v621, %v622
        %v624 = vrot.slane %v623, 2
        %v625 = vadd.f32 %v623, %v624
        %v626 = vrot.slane %v625, 1
        %v627 = vadd.f32 %v625, %v626
        %v628 = vmul.f32 %v434, %v434
        %v629 = vmul.f32 %v436, %v436
        %v630 = vmul.f32 %v438, %v438
        %v631 = vmul.f32 %v440, %v440
        %v632 = vmul.f32 %v444, %v444
        %v633 = vmul.f32 %v446, %v446
        %v634 = vmul.f32 %v448, %v448
        %v635 = vmul.f32 %v450, %v450
        %v636 = vmul.f32 %v454, %v454
        %v637 = vmul.f32 %v456, %v456
        %v638 = vmul.f32 %v458, %v458
        %v639 = vmul.f32 %v460, %v460
        %v640 = vmul.f32 %v464, %v464
        %v641 = vmul.f32 %v466, %v466
        %v642 = vmul.f32 %v468, %v468
        %v643 = vmul.f32 %v470, %v470
        %v644 = vadd.f32 %v628, %v630
        %v645 = vadd.f32 %v644, %v632
        %v646 = vadd.f32 %v645, %v634
        %v647 = vadd.f32 %v646, %v636
        %v648 = vadd.f32 %v647, %v638
        %v649 = vadd.f32 %v648, %v640
        %v650 = vadd.f32 %v649, %v642
        %v651 = vrot.slane %v650, 4
        %v652 = vadd.f32 %v650, %v651
        %v653 = vrot.slane %v652, 2
        %v654 = vadd.f32 %v652, %v653
        %v655 = vrot.slane %v654, 1
        %v656 = vadd.f32 %v654, %v655
        %v657 = vsel %vm386, %v629, 0.0
        %v658 = vsel %vm386, %v631, 0.0
        %v659 = vadd.f32 %v657, %v658
        %v660 = vsel %vm386, %v633, 0.0
        %v661 = vadd.f32 %v659, %v660
        %v662 = vsel %vm386, %v635, 0.0
        %v663 = vadd.f32 %v661, %v662
        %v664 = vsel %vm386, %v637, 0.0
        %v665 = vadd.f32 %v663, %v664
        %v666 = vsel %vm386, %v639, 0.0
        %v667 = vadd.f32 %v665, %v666
        %v668 = vsel %vm386, %v641, 0.0
        %v669 = vadd.f32 %v667, %v668
        %v670 = vsel %vm386, %v643, 0.0
        %v671 = vadd.f32 %v669, %v670
        %v672 = vrot.slane %v671, 4
        %v673 = vadd.f32 %v671, %v672
        %v674 = vrot.slane %v673, 2
        %v675 = vadd.f32 %v673, %v674
        %v676 = vrot.slane %v675, 1
        %v677 = vadd.f32 %v675, %v676
        %v678 = vld [vmem:[%s333] sm:$0xff]
        %v679 = vld [vmem:[%s333 + $0x8] sm:$0xff]
        %v680 = vadd.f32 %v678, %v606
        %v681 = vadd.f32 %v679, %v627
        %682 = vst [vmem:[%s333] sm:$0xff] %v680
        %683 = vst.msk [vmem:[%s333 + $0x8] sm:$0xff] %vm386, %v681
        %v684 = vld [vmem:[%s340] sm:$0xff]
        %v685 = vld [vmem:[%s340 + $0x8] sm:$0xff]
        %v686 = vadd.f32 %v684, %v656
        %v687 = vadd.f32 %v685, %v677
        %688 = vst [vmem:[%s340] sm:$0xff] %v686
        %689 = vst.msk [vmem:[%s340 + $0x8] sm:$0xff] %vm386, %v687
        %s690 = sand.u32 %s102, 1
        %s691 = scalar_lea.sflag [#allocation4], %s690
        %s692 = sand.u32 %s102, 1
        %s693 = smul.addr %s692, 32
        %s694 = scalar_lea.vmem [#allocation7], %s693
        %s695 = sand.u32 %s31, 1
        %s696 = scalar_lea.sflag [#allocation9], %s695
        %s697 = sand.u32 %s130, 1
        %s698 = smul.addr %s697, 32
        %s699 = scalar_lea.vmem [#allocation8], %s698
        %s700 = sand.u32 %s31, 1
        %s701 = scalar_lea.sflag [#allocation9], %s700
        %s702 = sand.u32 %s158, 1
        %s703 = smul.addr %s702, 32
        %s704 = scalar_lea.vmem [#allocation10], %s703
        %s705 = sand.u32 %s31, 1
        %s706 = scalar_lea.sflag [#allocation12], %s705
        %s707 = sand.u32 %s184, 1
        %s708 = smul.addr %s707, 16
        %s709 = scalar_lea.vmem [#allocation11], %s708
        %s710 = sand.u32 %s31, 1
        %s711 = scalar_lea.sflag [#allocation12], %s710
        %s712 = sand.u32 %s210, 1
        %s713 = smul.addr %s712, 16
        %s714 = scalar_lea.vmem [#allocation13], %s713
        // Predicated region
        $region41: #{tpu_custom_call.1} parent=27 // pred_check
          %p715 = pneg %p112
        $region42: #{tpu_custom_call.1} parent=27 // pred_check_branch
          %717 = sbr.rel (%p715) target = $region44
        $region43: #{tpu_custom_call.1} parent=27 // pred_region
          %s718 = sadd.s32 %s35, %s36
          %s719 = smul.u32 8, %s718
          %s721 = ssub.s32 512, 512
          %722 = vsyncadd %s691, %s721
          %s723 = smul.addr %s719, 64
          %s724 = scalar_lea.hbm %s2, %s723
          %s725 = sshll.u32 %s694, 4
          %s726 = int_to_ptr.vmem [resolvable:$true] %s725
          %731 = dma.vmem_to_hbm [thread:$0]  %s726, 512, %s724, %s691, 64, 64, 4
        $region44: #{tpu_custom_call.1} parent=27 // pred_fallthru
          _
        // Predicated region
        $region45: #{tpu_custom_call.1} parent=27 // pred_check
          %p732 = pneg %p140
        $region46: #{tpu_custom_call.1} parent=27 // pred_check_branch
          %734 = sbr.rel (%p732) target = $region48
        $region47: #{tpu_custom_call.1} parent=27 // pred_region
          %s735 = sadd.s32 %s35, %s36
          %s736 = smul.u32 8, %s735
          %s738 = ssub.s32 512, 512
          %739 = vsyncadd %s696, %s738
          %s740 = smul.addr %s736, 64
          %s741 = scalar_lea.hbm %s3, %s740
          %s742 = sshll.u32 %s699, 4
          %s743 = int_to_ptr.vmem [resolvable:$true] %s742
          %748 = dma.vmem_to_hbm [thread:$0]  %s743, 512, %s741, %s696, 64, 64, 4
        $region48: #{tpu_custom_call.1} parent=27 // pred_fallthru
          _
        // Predicated region
        $region49: #{tpu_custom_call.1} parent=27 // pred_check
          %p749 = pneg %p168
        $region50: #{tpu_custom_call.1} parent=27 // pred_check_branch
          %751 = sbr.rel (%p749) target = $region52
        $region51: #{tpu_custom_call.1} parent=27 // pred_region
          %s752 = sadd.s32 %s35, %s36
          %s753 = smul.u32 8, %s752
          %s755 = ssub.s32 512, 512
          %756 = vsyncadd %s701, %s755
          %s757 = smul.addr %s753, 64
          %s758 = scalar_lea.hbm %s4, %s757
          %s759 = sshll.u32 %s704, 4
          %s760 = int_to_ptr.vmem [resolvable:$true] %s759
          %765 = dma.vmem_to_hbm [thread:$0]  %s760, 512, %s758, %s701, 64, 64, 4
        $region52: #{tpu_custom_call.1} parent=27 // pred_fallthru
          _
        // Predicated region
        $region53: #{tpu_custom_call.1} parent=27 // pred_check
          %p766 = pneg %p194
        $region54: #{tpu_custom_call.1} parent=27 // pred_check_branch
          %768 = sbr.rel (%p766) target = $region56
        $region55: #{tpu_custom_call.1} parent=27 // pred_region
          %s770 = ssub.s32 256, 256
          %771 = vsyncadd %s706, %s770
          %s772 = smul.addr %s35, 2
          %s773 = smul.addr %s772, 128
          %s774 = scalar_lea.hbm %s5, %s773
          %s776 = sshll.u32 %s709, 4
          %s777 = int_to_ptr.vmem [resolvable:$true] %s776
          %779 = dma.vmem_to_hbm [thread:$0]  %s777, 256, %s774, %s706
        $region56: #{tpu_custom_call.1} parent=27 // pred_fallthru
          _
        // Predicated region
        $region57: #{tpu_custom_call.1} parent=27 // pred_check
          %p780 = pneg %p220
        $region58: #{tpu_custom_call.1} parent=27 // pred_check_branch
          %782 = sbr.rel (%p780) target = $region60
        $region59: #{tpu_custom_call.1} parent=27 // pred_region
          %s784 = ssub.s32 256, 256
          %785 = vsyncadd %s711, %s784
          %s786 = smul.addr %s35, 2
          %s787 = smul.addr %s786, 128
          %s788 = scalar_lea.hbm %s6, %s787
          %s790 = sshll.u32 %s714, 4
          %s791 = int_to_ptr.vmem [resolvable:$true] %s790
          %793 = dma.vmem_to_hbm [thread:$0]  %s791, 256, %s788, %s711
        $region60: #{tpu_custom_call.1} parent=27 // pred_fallthru
          _
      $region28: #{tpu_custom_call.1} parent=5 // pred_fallthru
        _
      %p794 = scmp.le.s32.totalorder 2, %s26
      // Predicated region
      $region61: #{tpu_custom_call.1} parent=5 // pred_check
        %p795 = pneg %p794
      $region62: #{tpu_custom_call.1} parent=5 // pred_check_branch
        %797 = sbr.rel (%p795) target = $region64
      $region63: #{tpu_custom_call.1} parent=5 // pred_region
        %s798 = ssub.s32 %s26, 2
        // Predicated region
        $region65: #{tpu_custom_call.1} parent=63 // pred_check
          %p799 = pneg %p118
        $region66: #{tpu_custom_call.1} parent=63 // pred_check_branch
          %801 = sbr.rel (%p799) target = $region68
        $region67: #{tpu_custom_call.1} parent=63 // pred_region
          %s802 = sand.u32 %s103, 1
          %s803 = scalar_lea.sflag [#allocation4], %s802
          %s804 = sand.u32 %s103, 1
          %s805 = smul.addr %s804, 32
          %s806 = scalar_lea.vmem [#allocation7], %s805
          %807 = dma.done %s803, 512
        $region68: #{tpu_custom_call.1} parent=63 // pred_fallthru
          _
        // Predicated region
        $region69: #{tpu_custom_call.1} parent=63 // pred_check
          %p808 = pneg %p146
        $region70: #{tpu_custom_call.1} parent=63 // pred_check_branch
          %810 = sbr.rel (%p808) target = $region72
        $region71: #{tpu_custom_call.1} parent=63 // pred_region
          %s811 = sand.u32 %s32, 1
          %s812 = scalar_lea.sflag [#allocation9], %s811
          %s813 = sand.u32 %s131, 1
          %s814 = smul.addr %s813, 32
          %s815 = scalar_lea.vmem [#allocation8], %s814
          %816 = dma.done %s812, 512
        $region72: #{tpu_custom_call.1} parent=63 // pred_fallthru
          _
        // Predicated region
        $region73: #{tpu_custom_call.1} parent=63 // pred_check
          %p817 = pneg %p174
        $region74: #{tpu_custom_call.1} parent=63 // pred_check_branch
          %819 = sbr.rel (%p817) target = $region76
        $region75: #{tpu_custom_call.1} parent=63 // pred_region
          %s820 = sand.u32 %s32, 1
          %s821 = scalar_lea.sflag [#allocation9], %s820
          %s822 = sand.u32 %s159, 1
          %s823 = smul.addr %s822, 32
          %s824 = scalar_lea.vmem [#allocation10], %s823
          %825 = dma.done %s821, 512
        $region76: #{tpu_custom_call.1} parent=63 // pred_fallthru
          _
        // Predicated region
        $region77: #{tpu_custom_call.1} parent=63 // pred_check
          %p826 = pneg %p200
        $region78: #{tpu_custom_call.1} parent=63 // pred_check_branch
          %828 = sbr.rel (%p826) target = $region80
        $region79: #{tpu_custom_call.1} parent=63 // pred_region
          %s829 = sand.u32 %s32, 1
          %s830 = scalar_lea.sflag [#allocation12], %s829
          %s831 = sand.u32 %s185, 1
          %s832 = smul.addr %s831, 16
          %s833 = scalar_lea.vmem [#allocation11], %s832
          %834 = dma.done %s830, 256
        $region80: #{tpu_custom_call.1} parent=63 // pred_fallthru
          _
        // Predicated region
        $region81: #{tpu_custom_call.1} parent=63 // pred_check
          %p835 = pneg %p226
        $region82: #{tpu_custom_call.1} parent=63 // pred_check_branch
          %837 = sbr.rel (%p835) target = $region84
        $region83: #{tpu_custom_call.1} parent=63 // pred_region
          %s838 = sand.u32 %s32, 1
          %s839 = scalar_lea.sflag [#allocation12], %s838
          %s840 = sand.u32 %s211, 1
          %s841 = smul.addr %s840, 16
          %s842 = scalar_lea.vmem [#allocation13], %s841
          %843 = dma.done %s839, 256
        $region84: #{tpu_custom_call.1} parent=63 // pred_fallthru
          _
      $region64: #{tpu_custom_call.1} parent=5 // pred_fallthru
        _
    $region6: #{tpu_custom_call.1} parent=1 // loop_footer
      %s30 = sadd.s32 1, %s26
    $region7: #{tpu_custom_call.1} parent=1 // loop_footer_branch
      %25 = sbr.rel target = $region3
    $region8: #{tpu_custom_call.1} parent=1 // loop_exit
      _
    %844 = vsyncpa [#allocation3], 1
    %s845 = scalar_lea.sflag [#allocation3], 1
    %846 = vsyncpa %s845, 1
    %847 = vsyncpa [#allocation6], 1
    %848 = vsyncpa [#allocation4], 1
    %s849 = scalar_lea.sflag [#allocation4], 1
    %850 = vsyncpa %s849, 1
    %851 = vsyncpa [#allocation9], 1
    %s852 = scalar_lea.sflag [#allocation9], 1
    %853 = vsyncpa %s852, 1
    %854 = vsyncpa [#allocation12], 1
    %s855 = scalar_lea.sflag [#allocation12], 1
    %856 = vsyncpa %s855, 1

</llo_original>
